<compile_context>
chip_gen: v5e
topology: v5e:2x2
jax: 0.10.0
libtpu: 0.0.40
codegen_flags: <defaults>
</compile_context>

<pallas_src>
import math

import jax
import jax.numpy as jnp
from jax.experimental import pallas as pl
from jax.experimental.pallas import tpu as pltpu

D_MODEL = 128
EMB_SIZE = 300
NUM_CLASSES = 2
VOCAB_SIZE = 50
VOCAB_PAD = 128      # lane-dense padded vocab for the on-chip one-hot gather
MAX_LEN = 512
HEAD_PAD = 128       # lane-dense padded width of the classifier output
NEG_INF = -1e30


def _round_up(x, m):
    return ((x + m - 1) // m) * m


# ---------------------------------------------------------------------------
# Fused kernel: on-chip embedding gather + PE + row-0 masked cross-attention
#               + classifier head + softmax
# ---------------------------------------------------------------------------
def _fused_kernel(q_ref, cat_ref, mask_ref, emb_ref, pe_ref,
                  w12_ref, b12_ref, w3_ref, b3_ref, o_ref):
    # q_ref   : (BT, 1, D)     token-0 query embeddings (emb_proj gather + pe[0], done in wrapper)
    # cat_ref : (BT*S, 1)      category token indices (flattened per batch block)
    # mask_ref: (BT, 1, S)     integer attention mask (>0 == keep)
    # emb_ref : (VP, D)        folded embedding table (emb @ Wt + bt), vocab lane-padded
    # pe_ref  : (1, S, D)      positional encodings
    # w12_ref : (D, D//4)      fc1 @ fc2 folded        b12_ref: (1, D//4)
    # w3_ref  : (D//4, 128)    fc3 lane-padded          b3_ref: (1, 128) pad cols = -1e30
    # o_ref   : (BT, 128)      softmax probabilities (padded columns are exactly 0)
    bt, _, d = q_ref.shape
    seq = pe_ref.shape[1]
    vp = emb_ref.shape[0]

    q3 = q_ref[...]                                   # (bt, 1, d)
    emb = emb_ref[...]                                # (vp, d)
    pe3 = pe_ref[...]                                 # (1, seq, d)

    # --- on-chip gather of category embeddings: one-hot @ emb_proj on the MXU ---
    cat = cat_ref[...]                                # (bt*seq, 1) int32
    iota_v = jax.lax.broadcasted_iota(jnp.int32, (bt * seq, vp), 1)
    onehot = (cat == iota_v).astype(jnp.float32)      # (bt*seq, vp)
    kv = jnp.dot(onehot, emb, preferred_element_type=jnp.float32)  # (bt*seq, d)
    kv3 = kv.reshape(bt, seq, d) + pe3                # xCategory + positionalEncoding

    # TODO(synk): stand-in for the pretrained BartForConditionalGeneration call
    # self.model(x, xCategory, attnMask): one masked cross-attention block
    # (x = queries, xCategory = keys/values).  Only query row 0 is computed because
    # only xOut[:, 0, :] is consumed downstream.
    scale = 1.0 / math.sqrt(d)
    bias3 = jnp.where(mask_ref[...] > 0, 0.0, NEG_INF)               # additive mask (bt,1,seq)
    s3 = jnp.einsum('bqd,bkd->bqk', q3, kv3,
                    preferred_element_type=jnp.float32) * scale + bias3
    m = jnp.max(s3, axis=-1, keepdims=True)
    p3 = jnp.exp(s3 - m)
    p3 = p3 / jnp.sum(p3, axis=-1, keepdims=True)                    # exact softmax
    ctx3 = jnp.einsum('bqk,bkd->bqd', p3, kv3,
                      preferred_element_type=jnp.float32)            # (bt, 1, d)
    ctx = jnp.sum(ctx3, axis=1)                                      # (bt, d) == xOut[:, 0, :]

    # classifier head: (fc1 . fc2 folded) -> ReLU (actOut) -> fc3 -> softmax
    h = jnp.dot(ctx, w12_ref[...], preferred_element_type=jnp.float32) + b12_ref[...]
    h = jnp.maximum(h, 0.0)
    logits = jnp.dot(h, w3_ref[...], preferred_element_type=jnp.float32) + b3_ref[...]
    m2 = jnp.max(logits, axis=-1, keepdims=True)
    e = jnp.exp(logits - m2)
    o_ref[...] = e / jnp.sum(e, axis=-1, keepdims=True)


def fused_forward(q, category, attn_mask, pe, emb_pad, w12, b12, w3p, b3p):
    B, S = category.shape
    D = q.shape[-1]
    VP = emb_pad.shape[0]

    # pad the key/sequence axis to a sublane multiple (padded keys are masked out)
    Sp = _round_up(S, 8)
    # batch rows per grid step: as large as the on-chip working set allows
    # (~ BT*Sp*(VP+D)*4 bytes of one-hot + kv), capped at 256, v7x-VMEM friendly.
    bt_cap = max(8, min(256, ((8192 // Sp) // 8) * 8))
    BT = max(8, min(bt_cap, _round_up(B, 8)))
    Bp = _round_up(B, BT)

    q = jnp.pad(q, ((0, Bp - B), (0, 0)))
    category = jnp.pad(category, ((0, Bp - B), (0, Sp - S)))
    attn_mask = jnp.pad(attn_mask, ((0, Bp - B), (0, Sp - S)))   # pad keys/rows are masked
    pe = jnp.pad(pe, ((0, Sp - S), (0, 0)))

    q3 = q[:, None, :]                                            # (Bp, 1, D)
    cat_flat = category.reshape(Bp * Sp, 1).astype(jnp.int32)     # 4 B/token to HBM
    mask3 = attn_mask.reshape(Bp, 1, Sp).astype(jnp.int32)
    pe3 = pe[None, :, :]                                          # (1, Sp, D)

    out = pl.pallas_call(
        _fused_kernel,
        out_shape=jax.ShapeDtypeStruct((Bp, HEAD_PAD), jnp.float32),
        grid=(Bp // BT,),
        in_specs=[
            pl.BlockSpec((BT, 1, D), lambda i: (i, 0, 0)),
            pl.BlockSpec((BT * Sp, 1), lambda i: (i, 0)),
            pl.BlockSpec((BT, 1, Sp), lambda i: (i, 0, 0)),
            pl.BlockSpec((VP, D), lambda i: (0, 0)),
            pl.BlockSpec((1, Sp, D), lambda i: (0, 0, 0)),
            pl.BlockSpec((D, D // 4), lambda i: (0, 0)),
            pl.BlockSpec((1, D // 4), lambda i: (0, 0)),
            pl.BlockSpec((D // 4, HEAD_PAD), lambda i: (0, 0)),
            pl.BlockSpec((1, HEAD_PAD), lambda i: (0, 0)),
        ],
        out_specs=pl.BlockSpec((BT, HEAD_PAD), lambda i: (i, 0)),
        compiler_params=pltpu.CompilerParams(
            dimension_semantics=("parallel",),
            vmem_limit_bytes=32 * 1024 * 1024,
        ),
    )(q3, cat_flat, mask3, emb_pad, pe3, w12, b12, w3p, b3p)
    return out[:B, :NUM_CLASSES]


# ---------------------------------------------------------------------------
# Parameter setup (deterministic, in-script) with exact algebraic pre-folds
# ---------------------------------------------------------------------------
def positional_encodings(max_len, d_model):
    position = jnp.arange(max_len, dtype=jnp.float32)[:, None]
    div_term = jnp.exp(jnp.arange(0, d_model, 2, dtype=jnp.float32)
                       * (-math.log(10000.0) / d_model))
    pe = jnp.zeros((max_len, d_model), jnp.float32)
    pe = pe.at[:, 0::2].set(jnp.sin(position * div_term))
    pe = pe.at[:, 1::2].set(jnp.cos(position * div_term))
    return pe


def init_params(key):
    ks = jax.random.split(key, 5)
    scale = 0.02
    emb = jax.random.normal(ks[0], (VOCAB_SIZE, EMB_SIZE), jnp.float32) * scale
    wt = jax.random.normal(ks[1], (EMB_SIZE, D_MODEL), jnp.float32) * scale
    bt_ = jnp.zeros((1, D_MODEL), jnp.float32)
    w1 = jax.random.normal(ks[2], (D_MODEL, D_MODEL // 2), jnp.float32) * scale
    b1 = jnp.zeros((1, D_MODEL // 2), jnp.float32)
    w2 = jax.random.normal(ks[3], (D_MODEL // 2, D_MODEL // 4), jnp.float32) * scale
    b2 = jnp.zeros((1, D_MODEL // 4), jnp.float32)
    w3 = jax.random.normal(ks[4], (D_MODEL // 4, NUM_CLASSES), jnp.float32) * scale
    b3 = jnp.zeros((1, NUM_CLASSES), jnp.float32)

    # ---- exact one-time folds (at init, outside the hot path) ----
    emb_proj = emb @ wt + bt_                     # embedding followed by transform Linear
    emb_pad = jnp.zeros((VOCAB_PAD, D_MODEL), jnp.float32).at[:VOCAB_SIZE].set(emb_proj)
    w12 = w1 @ w2                                 # fc1 . fc2 (no nonlinearity in between)
    b12 = b1 @ w2 + b2
    w3p = jnp.zeros((D_MODEL // 4, HEAD_PAD), jnp.float32).at[:, :NUM_CLASSES].set(w3)
    b3p = jnp.full((1, HEAD_PAD), NEG_INF, jnp.float32).at[:, :NUM_CLASSES].set(b3)

    return {
        "emb_pad": emb_pad,
        "pe": positional_encodings(MAX_LEN, D_MODEL),
        "w12": w12, "b12": b12, "w3p": w3p, "b3p": b3p,
    }


# ---------------------------------------------------------------------------
# Full forward
# ---------------------------------------------------------------------------
@jax.jit
def fake_review_identifier(params, text, category, attn_mask):
    S = category.shape[1]
    pe = params["pe"][:S, :]
    # transform(embedding(.)) is folded into emb_pad; only xOut[:, 0, :] is consumed
    # downstream, so gather token-0 queries only and hoist their pe[0] add here.
    q = jnp.take(params["emb_pad"], text[:, 0], axis=0) + pe[0:1, :]     # (B, D)
    return fused_forward(q, category, attn_mask, pe, params["emb_pad"],
                         params["w12"], params["b12"],
                         params["w3p"], params["b3p"])                   # (B, num_classes)


if __name__ == "__main__":
    key = jax.random.PRNGKey(0)
    pkey, tkey, ckey = jax.random.split(key, 3)
    params = init_params(pkey)

    B, S = 2, 8
    text = jax.random.randint(tkey, (B, S), 0, VOCAB_SIZE, dtype=jnp.int32)
    category = jax.random.randint(ckey, (B, S), 0, VOCAB_SIZE, dtype=jnp.int32)
    attn_mask = jnp.ones((B, S), jnp.int32).at[:, -2:].set(0)   # mask last 2 key slots

    out = fake_review_identifier(params, text, category, attn_mask)
    out = jax.block_until_ready(out)

    assert out.shape == (B, NUM_CLASSES)
    assert bool(jnp.all(jnp.isfinite(out)))
    assert bool(jnp.allclose(jnp.sum(out, axis=-1), 1.0, atol=1e-5))  # softmax rows sum to 1
    print("KERNEL_OK")
</pallas_src>

<mosaic_0001>
module attributes {stable_mosaic.version = 11 : i64} {
  func.func @_fused_kernel(%arg0: i32, %arg1: memref<8x1x128xf32, #tpu.memory_space<vmem>>, %arg2: memref<64x1xi32, #tpu.memory_space<vmem>>, %arg3: memref<8x1x8xi32, #tpu.memory_space<vmem>>, %arg4: memref<128x128xf32, #tpu.memory_space<vmem>>, %arg5: memref<1x8x128xf32, #tpu.memory_space<vmem>>, %arg6: memref<128x32xf32, #tpu.memory_space<vmem>>, %arg7: memref<1x32xf32, #tpu.memory_space<vmem>>, %arg8: memref<32x128xf32, #tpu.memory_space<vmem>>, %arg9: memref<1x128xf32, #tpu.memory_space<vmem>>, %arg10: memref<8x128xf32, #tpu.memory_space<vmem>>) attributes {dimension_semantics = [#tpu.dimension_semantics<parallel>], iteration_bounds = array<i64: 1>, scalar_prefetch = 0 : i64, scratch_operands = 0 : i64, tpu.core_type = #tpu.core_type<tc>, window_params = [{transform_indices = @transform_0, window_bounds = array<i64: 8, 1, 128>}, {transform_indices = @transform_1, window_bounds = array<i64: 64, 1>}, {transform_indices = @transform_2, window_bounds = array<i64: 8, 1, 8>}, {pipeline_mode = #tpu.pipeline_mode<synchronous>, transform_indices = @transform_3, window_bounds = array<i64: 128, 128>}, {pipeline_mode = #tpu.pipeline_mode<synchronous>, transform_indices = @transform_4, window_bounds = array<i64: 1, 8, 128>}, {pipeline_mode = #tpu.pipeline_mode<synchronous>, transform_indices = @transform_5, window_bounds = array<i64: 128, 32>}, {pipeline_mode = #tpu.pipeline_mode<synchronous>, transform_indices = @transform_6, window_bounds = array<i64: 1, 32>}, {pipeline_mode = #tpu.pipeline_mode<synchronous>, transform_indices = @transform_7, window_bounds = array<i64: 32, 128>}, {pipeline_mode = #tpu.pipeline_mode<synchronous>, transform_indices = @transform_8, window_bounds = array<i64: 1, 128>}, {transform_indices = @transform_9, window_bounds = array<i64: 8, 128>}]} {
    %c0 = arith.constant 0 : index
    %c0_0 = arith.constant 0 : index
    %c0_1 = arith.constant 0 : index
    %0 = vector.load %arg1[%c0, %c0_0, %c0_1] : memref<8x1x128xf32, #tpu.memory_space<vmem>>, vector<8x1x128xf32>
    %c0_2 = arith.constant 0 : index
    %c0_3 = arith.constant 0 : index
    %1 = vector.load %arg4[%c0_2, %c0_3] : memref<128x128xf32, #tpu.memory_space<vmem>>, vector<128x128xf32>
    %c0_4 = arith.constant 0 : index
    %c0_5 = arith.constant 0 : index
    %c0_6 = arith.constant 0 : index
    %2 = vector.load %arg5[%c0_4, %c0_5, %c0_6] : memref<1x8x128xf32, #tpu.memory_space<vmem>>, vector<1x8x128xf32>
    %c0_7 = arith.constant 0 : index
    %c0_8 = arith.constant 0 : index
    %3 = vector.load %arg2[%c0_7, %c0_8] : memref<64x1xi32, #tpu.memory_space<vmem>>, vector<64x1xi32>
    %4 = tpu.iota {dimensions = array<i32: 1>} : vector<64x128xi32>
    %5 = vector.broadcast %3 : vector<64x1xi32> to vector<64x128xi32>
    %6 = arith.cmpi eq, %5, %4 : vector<64x128xi32>
    %7 = arith.extui %6 : vector<64x128xi1> to vector<64x128xi32>
    %8 = arith.sitofp %7 : vector<64x128xi32> to vector<64x128xf32>
    %cst = arith.constant dense<0.000000e+00> : vector<64x128xf32>
    %9 = tpu.matmul %8, %1, %cst {dimension_numbers = #tpu.dot_dimension_numbers<[1], [0], [0], [1], [0, 0, 1, 1], [], []>} : vector<64x128xf32>, vector<128x128xf32>, vector<64x128xf32> -> vector<64x128xf32>
    %10 = vector.shape_cast %9 : vector<64x128xf32> to vector<8x8x128xf32>
    %11 = vector.broadcast %2 : vector<1x8x128xf32> to vector<8x8x128xf32>
    %12 = arith.addf %10, %11 : vector<8x8x128xf32>
    %c0_9 = arith.constant 0 : index
    %c0_10 = arith.constant 0 : index
    %c0_11 = arith.constant 0 : index
    %13 = vector.load %arg3[%c0_9, %c0_10, %c0_11] : memref<8x1x8xi32, #tpu.memory_space<vmem>>, vector<8x1x8xi32>
    %c0_i32 = arith.constant 0 : i32
    %14 = vector.broadcast %c0_i32 : i32 to vector<8x1x8xi32>
    %15 = arith.cmpi sgt, %13, %14 : vector<8x1x8xi32>
    %cst_12 = arith.constant 0.000000e+00 : f32
    %cst_13 = arith.constant -1.000000e+30 : f32
    %16 = vector.broadcast %cst_12 : f32 to vector<8x1x8xf32>
    %17 = vector.broadcast %cst_13 : f32 to vector<8x1x8xf32>
    %18 = arith.select %15, %16, %17 : vector<8x1x8xi1>, vector<8x1x8xf32>
    "tpu.trace_start"() <{level = 10 : i32, message = "bqd,bkd->bqk"}> : () -> ()
    %cst_14 = arith.constant dense<0.000000e+00> : vector<8x1x8xf32>
    %19 = tpu.matmul %0, %12, %cst_14 {dimension_numbers = #tpu.dot_dimension_numbers<[2], [2], [1], [1], [0, 0, 0, 1, 1, 1], [0], [0]>} : vector<8x1x128xf32>, vector<8x8x128xf32>, vector<8x1x8xf32> -> vector<8x1x8xf32>
    "tpu.trace_stop"() : () -> ()
    %cst_15 = arith.constant 0.0883883461 : f32
    %20 = vector.broadcast %cst_15 : f32 to vector<8x1x8xf32>
    %21 = arith.mulf %19, %20 : vector<8x1x8xf32>
    %22 = arith.addf %21, %18 : vector<8x1x8xf32>
    %cst_16 = arith.constant dense<0xFF800000> : vector<8x1xf32>
    %23 = vector.multi_reduction <maximumf>, %22, %cst_16 [2] : vector<8x1x8xf32> to vector<8x1xf32>
    %24 = vector.shape_cast %23 : vector<8x1xf32> to vector<8x1x1xf32>
    %25 = vector.broadcast %24 : vector<8x1x1xf32> to vector<8x1x8xf32>
    %26 = arith.subf %22, %25 : vector<8x1x8xf32>
    %27 = math.exp %26 : vector<8x1x8xf32>
    %cst_17 = arith.constant dense<0.000000e+00> : vector<8x1xf32>
    %28 = vector.multi_reduction <add>, %27, %cst_17 [2] : vector<8x1x8xf32> to vector<8x1xf32>
    %29 = vector.shape_cast %28 : vector<8x1xf32> to vector<8x1x1xf32>
    %30 = vector.broadcast %29 : vector<8x1x1xf32> to vector<8x1x8xf32>
    %31 = arith.divf %27, %30 : vector<8x1x8xf32>
    "tpu.trace_start"() <{level = 10 : i32, message = "bqk,bkd->bqd"}> : () -> ()
    %cst_18 = arith.constant dense<0.000000e+00> : vector<8x1x128xf32>
    %32 = tpu.matmul %31, %12, %cst_18 {dimension_numbers = #tpu.dot_dimension_numbers<[2], [1], [1], [2], [0, 0, 0, 1, 1, 2], [0], [0]>} : vector<8x1x8xf32>, vector<8x8x128xf32>, vector<8x1x128xf32> -> vector<8x1x128xf32>
    "tpu.trace_stop"() : () -> ()
    %cst_19 = arith.constant dense<0.000000e+00> : vector<8x128xf32>
    %33 = vector.multi_reduction <add>, %32, %cst_19 [1] : vector<8x1x128xf32> to vector<8x128xf32>
    %c0_20 = arith.constant 0 : index
    %c0_21 = arith.constant 0 : index
    %34 = vector.load %arg6[%c0_20, %c0_21] : memref<128x32xf32, #tpu.memory_space<vmem>>, vector<128x32xf32>
    %cst_22 = arith.constant dense<0.000000e+00> : vector<8x32xf32>
    %35 = tpu.matmul %33, %34, %cst_22 {dimension_numbers = #tpu.dot_dimension_numbers<[1], [0], [0], [1], [0, 0, 1, 1], [], []>} : vector<8x128xf32>, vector<128x32xf32>, vector<8x32xf32> -> vector<8x32xf32>
    %c0_23 = arith.constant 0 : index
    %c0_24 = arith.constant 0 : index
    %36 = vector.load %arg7[%c0_23, %c0_24] : memref<1x32xf32, #tpu.memory_space<vmem>>, vector<1x32xf32>
    %37 = vector.broadcast %36 : vector<1x32xf32> to vector<8x32xf32>
    %38 = arith.addf %35, %37 : vector<8x32xf32>
    %cst_25 = arith.constant 0.000000e+00 : f32
    %39 = vector.broadcast %cst_25 : f32 to vector<8x32xf32>
    %40 = arith.maximumf %38, %39 : vector<8x32xf32>
    %c0_26 = arith.constant 0 : index
    %c0_27 = arith.constant 0 : index
    %41 = vector.load %arg8[%c0_26, %c0_27] : memref<32x128xf32, #tpu.memory_space<vmem>>, vector<32x128xf32>
    %cst_28 = arith.constant dense<0.000000e+00> : vector<8x128xf32>
    %42 = tpu.matmul %40, %41, %cst_28 {dimension_numbers = #tpu.dot_dimension_numbers<[1], [0], [0], [1], [0, 0, 1, 1], [], []>} : vector<8x32xf32>, vector<32x128xf32>, vector<8x128xf32> -> vector<8x128xf32>
    %c0_29 = arith.constant 0 : index
    %c0_30 = arith.constant 0 : index
    %43 = vector.load %arg9[%c0_29, %c0_30] : memref<1x128xf32, #tpu.memory_space<vmem>>, vector<1x128xf32>
    %44 = vector.broadcast %43 : vector<1x128xf32> to vector<8x128xf32>
    %45 = arith.addf %42, %44 : vector<8x128xf32>
    %cst_31 = arith.constant dense<0xFF800000> : vector<8xf32>
    %46 = vector.multi_reduction <maximumf>, %45, %cst_31 [1] : vector<8x128xf32> to vector<8xf32>
    %47 = vector.shape_cast %46 : vector<8xf32> to vector<8x1xf32>
    %48 = vector.broadcast %47 : vector<8x1xf32> to vector<8x128xf32>
    %49 = arith.subf %45, %48 : vector<8x128xf32>
    %50 = math.exp %49 : vector<8x128xf32>
    %cst_32 = arith.constant dense<0.000000e+00> : vector<8xf32>
    %51 = vector.multi_reduction <add>, %50, %cst_32 [1] : vector<8x128xf32> to vector<8xf32>
    %52 = vector.shape_cast %51 : vector<8xf32> to vector<8x1xf32>
    %53 = vector.broadcast %52 : vector<8x1xf32> to vector<8x128xf32>
    %54 = arith.divf %50, %53 : vector<8x128xf32>
    %c0_33 = arith.constant 0 : index
    %c0_34 = arith.constant 0 : index
    %55 = vector.load %arg10[%c0_33, %c0_34] : memref<8x128xf32, #tpu.memory_space<vmem>>, vector<8x128xf32>
    tpu.vector_store %arg10[%c0_33, %c0_34], %54 {strides = array<i32>} : memref<8x128xf32, #tpu.memory_space<vmem>>, vector<8x128xf32>,
    return
  }
  func.func @transform_0(%arg0: i32) -> (i32, i32, i32) {
    %c0_i32 = arith.constant 0 : i32
    %c0_i32_0 = arith.constant 0 : i32
    %c0_i32_1 = arith.constant 0 : i32
    return %arg0, %c0_i32, %c0_i32_0 : i32, i32, i32
  }
  func.func @transform_1(%arg0: i32) -> (i32, i32) {
    %c0_i32 = arith.constant 0 : i32
    %c0_i32_0 = arith.constant 0 : i32
    return %arg0, %c0_i32 : i32, i32
  }
  func.func @transform_2(%arg0: i32) -> (i32, i32, i32) {
    %c0_i32 = arith.constant 0 : i32
    %c0_i32_0 = arith.constant 0 : i32
    %c0_i32_1 = arith.constant 0 : i32
    return %arg0, %c0_i32, %c0_i32_0 : i32, i32, i32
  }
  func.func @transform_3(%arg0: i32) -> (i32, i32) {
    %c0_i32 = arith.constant 0 : i32
    %c0_i32_0 = arith.constant 0 : i32
    %c0_i32_1 = arith.constant 0 : i32
    return %c0_i32, %c0_i32_0 : i32, i32
  }
  func.func @transform_4(%arg0: i32) -> (i32, i32, i32) {
    %c0_i32 = arith.constant 0 : i32
    %c0_i32_0 = arith.constant 0 : i32
    %c0_i32_1 = arith.constant 0 : i32
    %c0_i32_2 = arith.constant 0 : i32
    return %c0_i32, %c0_i32_0, %c0_i32_1 : i32, i32, i32
  }
  func.func @transform_5(%arg0: i32) -> (i32, i32) {
    %c0_i32 = arith.constant 0 : i32
    %c0_i32_0 = arith.constant 0 : i32
    %c0_i32_1 = arith.constant 0 : i32
    return %c0_i32, %c0_i32_0 : i32, i32
  }
  func.func @transform_6(%arg0: i32) -> (i32, i32) {
    %c0_i32 = arith.constant 0 : i32
    %c0_i32_0 = arith.constant 0 : i32
    %c0_i32_1 = arith.constant 0 : i32
    return %c0_i32, %c0_i32_0 : i32, i32
  }
  func.func @transform_7(%arg0: i32) -> (i32, i32) {
    %c0_i32 = arith.constant 0 : i32
    %c0_i32_0 = arith.constant 0 : i32
    %c0_i32_1 = arith.constant 0 : i32
    return %c0_i32, %c0_i32_0 : i32, i32
  }
  func.func @transform_8(%arg0: i32) -> (i32, i32) {
    %c0_i32 = arith.constant 0 : i32
    %c0_i32_0 = arith.constant 0 : i32
    %c0_i32_1 = arith.constant 0 : i32
    return %c0_i32, %c0_i32_0 : i32, i32
  }
  func.func @transform_9(%arg0: i32) -> (i32, i32) {
    %c0_i32 = arith.constant 0 : i32
    %c0_i32_0 = arith.constant 0 : i32
    return %arg0, %c0_i32 : i32, i32
  }
}

</mosaic_0001>

<llo_original>
// kernel: fake_review_identifier.1
$region0: #{fake_review_identifier.1}
  #allocation0 [shape = 'u32[]', space=smem, size = 0x4, offset = 0x4, fixed_abs, tag = 'smem constant byte address 0x4 - core index']
  #allocation1 [shape = 'u32[72,128]{1,0:T(1,128)}', space=vmem, size = 0x9000, scoped, tag = 'internal scratch']
  %s0 = inlined_call_operand.vmem [shape: f32[8,1,128], index: 0, kind: input, shape index: {}]
  %s1 = inlined_call_operand.vmem [shape: s32[64,1], index: 1, kind: input, shape index: {}]
  %s2 = inlined_call_operand.vmem [shape: s32[8,1,8], index: 2, kind: input, shape index: {}]
  %s3 = inlined_call_operand.vmem [shape: f32[128,128], index: 3, kind: input, shape index: {}]
  %s4 = inlined_call_operand.vmem [shape: f32[1,8,128], index: 4, kind: input, shape index: {}]
  %s5 = inlined_call_operand.vmem [shape: f32[128,32], index: 5, kind: input, shape index: {}]
  %s6 = inlined_call_operand.vmem [shape: f32[1,32], index: 6, kind: input, shape index: {}]
  %s7 = inlined_call_operand.vmem [shape: f32[32,128], index: 7, kind: input, shape index: {}]
  %s8 = inlined_call_operand.vmem [shape: f32[1,128], index: 8, kind: input, shape index: {}]
  %s9 = inlined_call_operand.vmem [shape: f32[8,128], index: 9, kind: output, shape index: {}]
  %s10 = sld [smem:[#allocation0]]
  $region46: #{fake_review_identifier.1} parent=0
    _
  %s12 = ssub.s32 1, %s10
  %s13 = scalar_select 0, %s12, %s10
  // Predicated region
  $region2: #{fake_review_identifier.1} parent=0 // pred_check
    _
  $region3: #{fake_review_identifier.1} parent=0 // pred_check_branch
    %15 = sbr.rel (0) target = $region5
  $region4: #{fake_review_identifier.1} parent=0 // pred_region
    _
  $region5: #{fake_review_identifier.1} parent=0 // pred_fallthru
    _
  // Predicated region
  $region6: #{fake_review_identifier.1} parent=0 // pred_check
    _
  $region7: #{fake_review_identifier.1} parent=0 // pred_check_branch
    %17 = sbr.rel (0) target = $region9
  $region8: #{fake_review_identifier.1} parent=0 // pred_region
    _
  $region9: #{fake_review_identifier.1} parent=0 // pred_fallthru
    _
  // Predicated region
  $region10: #{fake_review_identifier.1} parent=0 // pred_check
    _
  $region11: #{fake_review_identifier.1} parent=0 // pred_check_branch
    %19 = sbr.rel (0) target = $region13
  $region12: #{fake_review_identifier.1} parent=0 // pred_region
    _
  $region13: #{fake_review_identifier.1} parent=0 // pred_fallthru
    _
  // Predicated region
  $region14: #{fake_review_identifier.1} parent=0 // pred_check
    _
  $region15: #{fake_review_identifier.1} parent=0 // pred_check_branch
    %21 = sbr.rel (0) target = $region17
  $region16: #{fake_review_identifier.1} parent=0 // pred_region
    _
  $region17: #{fake_review_identifier.1} parent=0 // pred_fallthru
    _
  // Predicated region
  $region18: #{fake_review_identifier.1} parent=0 // pred_check
    _
  $region19: #{fake_review_identifier.1} parent=0 // pred_check_branch
    %23 = sbr.rel (0) target = $region21
  $region20: #{fake_review_identifier.1} parent=0 // pred_region
    _
  $region21: #{fake_review_identifier.1} parent=0 // pred_fallthru
    _
  // Predicated region
  $region22: #{fake_review_identifier.1} parent=0 // pred_check
    _
  $region23: #{fake_review_identifier.1} parent=0 // pred_check_branch
    %25 = sbr.rel (0) target = $region25
  $region24: #{fake_review_identifier.1} parent=0 // pred_region
    _
  $region25: #{fake_review_identifier.1} parent=0 // pred_fallthru
    _
  // Predicated region
  $region26: #{fake_review_identifier.1} parent=0 // pred_check
    _
  $region27: #{fake_review_identifier.1} parent=0 // pred_check_branch
    %27 = sbr.rel (0) target = $region29
  $region28: #{fake_review_identifier.1} parent=0 // pred_region
    _
  $region29: #{fake_review_identifier.1} parent=0 // pred_fallthru
    _
  // Predicated region
  $region30: #{fake_review_identifier.1} parent=0 // pred_check
    _
  $region31: #{fake_review_identifier.1} parent=0 // pred_check_branch
    %29 = sbr.rel (0) target = $region33
  $region32: #{fake_review_identifier.1} parent=0 // pred_region
    _
  $region33: #{fake_review_identifier.1} parent=0 // pred_fallthru
    _
  // Predicated region
  $region34: #{fake_review_identifier.1} parent=0 // pred_check
    _
  $region35: #{fake_review_identifier.1} parent=0 // pred_check_branch
    %31 = sbr.rel (0) target = $region37
  $region36: #{fake_review_identifier.1} parent=0 // pred_region
    _
  $region37: #{fake_review_identifier.1} parent=0 // pred_fallthru
    _
  %v32 = vld [vmem:[%s0] sm:$0x1]
  %v33 = vld [vmem:[%s0 + $0x1] sm:$0x1]
  %v34 = vld [vmem:[%s0 + $0x2] sm:$0x1]
  %v35 = vld [vmem:[%s0 + $0x3] sm:$0x1]
  %v36 = vld [vmem:[%s0 + $0x4] sm:$0x1]
  %v37 = vld [vmem:[%s0 + $0x5] sm:$0x1]
  %v38 = vld [vmem:[%s0 + $0x6] sm:$0x1]
  %v39 = vld [vmem:[%s0 + $0x7] sm:$0x1]
  %v40 = vld [vmem:[%s3] sm:$0xff]
  %v41 = vld [vmem:[%s3 + $0x8] sm:$0xff]
  %v42 = vld [vmem:[%s3 + $0x10] sm:$0xff]
  %v43 = vld [vmem:[%s3 + $0x18] sm:$0xff]
  %v44 = vld [vmem:[%s3 + $0x20] sm:$0xff]
  %v45 = vld [vmem:[%s3 + $0x28] sm:$0xff]
  %v46 = vld [vmem:[%s3 + $0x30] sm:$0xff]
  %v47 = vld [vmem:[%s3 + $0x38] sm:$0xff]
  %v48 = vld [vmem:[%s3 + $0x40] sm:$0xff]
  %v49 = vld [vmem:[%s3 + $0x48] sm:$0xff]
  %v50 = vld [vmem:[%s3 + $0x50] sm:$0xff]
  %v51 = vld [vmem:[%s3 + $0x58] sm:$0xff]
  %v52 = vld [vmem:[%s3 + $0x60] sm:$0xff]
  %v53 = vld [vmem:[%s3 + $0x68] sm:$0xff]
  %v54 = vld [vmem:[%s3 + $0x70] sm:$0xff]
  %v55 = vld [vmem:[%s3 + $0x78] sm:$0xff]
  %v56 = vld [vmem:[%s4] sm:$0xff]
  %v57 = vld [vmem:[%s1] sm:$0xff]
  %v58 = vld [vmem:[%s1 + $0x8] sm:$0xff]
  %v59 = vld [vmem:[%s1 + $0x10] sm:$0xff]
  %v60 = vld [vmem:[%s1 + $0x18] sm:$0xff]
  %v61 = vld [vmem:[%s1 + $0x20] sm:$0xff]
  %v62 = vld [vmem:[%s1 + $0x28] sm:$0xff]
  %v63 = vld [vmem:[%s1 + $0x30] sm:$0xff]
  %v64 = vld [vmem:[%s1 + $0x38] sm:$0xff]
  %v65 = vlaneseq
  %v66 = vand.u32 %v65, 127
  %67 = vset.pattern.permute.xlu0 0
  %68 = vperm.xlu0 %67, %v57
  %v69 = vpop.permute.xlu0 %68
  %70 = vset.pattern.permute.xlu0 0
  %71 = vperm.xlu0 %70, %v58
  %v72 = vpop.permute.xlu0 %71
  %73 = vset.pattern.permute.xlu0 0
  %74 = vperm.xlu0 %73, %v59
  %v75 = vpop.permute.xlu0 %74
  %76 = vset.pattern.permute.xlu0 0
  %77 = vperm.xlu0 %76, %v60
  %v78 = vpop.permute.xlu0 %77
  %79 = vset.pattern.permute.xlu0 0
  %80 = vperm.xlu0 %79, %v61
  %v81 = vpop.permute.xlu0 %80
  %82 = vset.pattern.permute.xlu0 0
  %83 = vperm.xlu0 %82, %v62
  %v84 = vpop.permute.xlu0 %83
  %85 = vset.pattern.permute.xlu0 0
  %86 = vperm.xlu0 %85, %v63
  %v87 = vpop.permute.xlu0 %86
  %88 = vset.pattern.permute.xlu0 0
  %89 = vperm.xlu0 %88, %v64
  %v90 = vpop.permute.xlu0 %89
  %vm91 = vcmp.eq.s32.totalorder %v69, %v66
  %vm92 = vcmp.eq.s32.totalorder %v72, %v66
  %vm93 = vcmp.eq.s32.totalorder %v75, %v66
  %vm94 = vcmp.eq.s32.totalorder %v78, %v66
  %vm95 = vcmp.eq.s32.totalorder %v81, %v66
  %vm96 = vcmp.eq.s32.totalorder %v84, %v66
  %vm97 = vcmp.eq.s32.totalorder %v87, %v66
  %vm98 = vcmp.eq.s32.totalorder %v90, %v66
  %v99 = vsel %vm91, 1, 0
  %v100 = vsel %vm92, 1, 0
  %v101 = vsel %vm93, 1, 0
  %v102 = vsel %vm94, 1, 0
  %v103 = vsel %vm95, 1, 0
  %v104 = vsel %vm96, 1, 0
  %v105 = vsel %vm97, 1, 0
  %v106 = vsel %vm98, 1, 0
  %v107 = vcvt.s32.f32 %v99
  %v108 = vcvt.s32.f32 %v100
  %v109 = vcvt.s32.f32 %v101
  %v110 = vcvt.s32.f32 %v102
  %v111 = vcvt.s32.f32 %v103
  %v112 = vcvt.s32.f32 %v104
  %v113 = vcvt.s32.f32 %v105
  %v114 = vcvt.s32.f32 %v106
  %115 = vmatpush.msra.mxu0 %v55
  %116 = vmatpush.msra.mxu0 %v54
  %117 = vmatpush.msra.mxu0 %v53
  %118 = vmatpush.msra.mxu0 %v52
  %119 = vmatpush.msra.mxu0 %v51
  %120 = vmatpush.msra.mxu0 %v50
  %121 = vmatpush.msra.mxu0 %v49
  %122 = vmatpush.msra.mxu0 %v48
  %123 = vmatpush.msra.mxu0 %v47
  %124 = vmatpush.msra.mxu0 %v46
  %125 = vmatpush.msra.mxu0 %v45
  %126 = vmatpush.msra.mxu0 %v44
  %127 = vmatpush.msra.mxu0 %v43
  %128 = vmatpush.msra.mxu0 %v42
  %129 = vmatpush.msra.mxu0 %v41
  %130 = vmatpush.msra.mxu0 %v40
  %131 = vmatmul.f32.gmra.mxu0 %v107
  %v132 = vpop.f32.mrf.mxu0
  %v133 = vadd.f32 0.0, %v132
  %134 = vmatmul.f32.gmra.mxu0 %v108
  %v135 = vpop.f32.mrf.mxu0
  %v136 = vadd.f32 0.0, %v135
  %137 = vmatmul.f32.gmra.mxu0 %v109
  %v138 = vpop.f32.mrf.mxu0
  %v139 = vadd.f32 0.0, %v138
  %140 = vmatmul.f32.gmra.mxu0 %v110
  %v141 = vpop.f32.mrf.mxu0
  %v142 = vadd.f32 0.0, %v141
  %143 = vmatmul.f32.gmra.mxu0 %v111
  %v144 = vpop.f32.mrf.mxu0
  %v145 = vadd.f32 0.0, %v144
  %146 = vmatmul.f32.gmra.mxu0 %v112
  %v147 = vpop.f32.mrf.mxu0
  %v148 = vadd.f32 0.0, %v147
  %149 = vmatmul.f32.gmra.mxu0 %v113
  %v150 = vpop.f32.mrf.mxu0
  %v151 = vadd.f32 0.0, %v150
  %152 = vmatmul.f32.gmra.mxu0 %v114
  %v153 = vpop.f32.mrf.mxu0
  %v154 = vadd.f32 0.0, %v153
  %155 = vdwg.mxu0
  %v156 = vadd.f32 %v133, %v56
  %v157 = vadd.f32 %v136, %v56
  %v158 = vadd.f32 %v139, %v56
  %v159 = vadd.f32 %v142, %v56
  %v160 = vadd.f32 %v145, %v56
  %v161 = vadd.f32 %v148, %v56
  %v162 = vadd.f32 %v151, %v56
  %v163 = vadd.f32 %v154, %v56
  %v164 = vld [vmem:[%s2] sm:$0x1]
  %v165 = vld [vmem:[%s2 + $0x1] sm:$0x1]
  %v166 = vld [vmem:[%s2 + $0x2] sm:$0x1]
  %v167 = vld [vmem:[%s2 + $0x3] sm:$0x1]
  %v168 = vld [vmem:[%s2 + $0x4] sm:$0x1]
  %v169 = vld [vmem:[%s2 + $0x5] sm:$0x1]
  %v170 = vld [vmem:[%s2 + $0x6] sm:$0x1]
  %v171 = vld [vmem:[%s2 + $0x7] sm:$0x1]
  %vm172 = vcmp.gt.s32.totalorder %v164, 0
  %vm173 = vcmp.gt.s32.totalorder %v165, 0
  %vm174 = vcmp.gt.s32.totalorder %v166, 0
  %vm175 = vcmp.gt.s32.totalorder %v167, 0
  %vm176 = vcmp.gt.s32.totalorder %v168, 0
  %vm177 = vcmp.gt.s32.totalorder %v169, 0
  %vm178 = vcmp.gt.s32.totalorder %v170, 0
  %vm179 = vcmp.gt.s32.totalorder %v171, 0
  %v180 = vsel %vm172, 0.0, -1e+30
  %v181 = vsel %vm173, 0.0, -1e+30
  %v182 = vsel %vm174, 0.0, -1e+30
  %v183 = vsel %vm175, 0.0, -1e+30
  %v184 = vsel %vm176, 0.0, -1e+30
  %v185 = vsel %vm177, 0.0, -1e+30
  %v186 = vsel %vm178, 0.0, -1e+30
  %v187 = vsel %vm179, 0.0, -1e+30
  %188 = vmatpush.xpose.msra.mxu0 0.0
  %189 = vmatpush.xpose.msra.mxu0 0.0
  %190 = vmatpush.xpose.msra.mxu0 0.0
  %191 = vmatpush.xpose.msra.mxu0 0.0
  %192 = vmatpush.xpose.msra.mxu0 0.0
  %193 = vmatpush.xpose.msra.mxu0 0.0
  %194 = vmatpush.xpose.msra.mxu0 0.0
  %195 = vmatpush.xpose.msra.mxu0 0.0
  %196 = vmatpush.xpose.msra.mxu0 0.0
  %197 = vmatpush.xpose.msra.mxu0 0.0
  %198 = vmatpush.xpose.msra.mxu0 0.0
  %199 = vmatpush.xpose.msra.mxu0 0.0
  %200 = vmatpush.xpose.msra.mxu0 0.0
  %201 = vmatpush.xpose.msra.mxu0 0.0
  %202 = vmatpush.xpose.msra.mxu0 0.0
  %203 = vmatpush.xpose.msra.mxu0 %v156
  %204 = vmatmul.f32.gmra.mxu0 %v32
  %v205 = vpop.f32.mrf.mxu0
  %v206 = vadd.f32 0.0, %v205
  %207 = vdwg.mxu0
  %208 = vmatpush.xpose.msra.mxu0 0.0
  %209 = vmatpush.xpose.msra.mxu0 0.0
  %210 = vmatpush.xpose.msra.mxu0 0.0
  %211 = vmatpush.xpose.msra.mxu0 0.0
  %212 = vmatpush.xpose.msra.mxu0 0.0
  %213 = vmatpush.xpose.msra.mxu0 0.0
  %214 = vmatpush.xpose.msra.mxu0 0.0
  %215 = vmatpush.xpose.msra.mxu0 0.0
  %216 = vmatpush.xpose.msra.mxu0 0.0
  %217 = vmatpush.xpose.msra.mxu0 0.0
  %218 = vmatpush.xpose.msra.mxu0 0.0
  %219 = vmatpush.xpose.msra.mxu0 0.0
  %220 = vmatpush.xpose.msra.mxu0 0.0
  %221 = vmatpush.xpose.msra.mxu0 0.0
  %222 = vmatpush.xpose.msra.mxu0 0.0
  %223 = vmatpush.xpose.msra.mxu0 %v157
  %224 = vmatmul.f32.gmra.mxu0 %v33
  %v225 = vpop.f32.mrf.mxu0
  %v226 = vadd.f32 0.0, %v225
  %227 = vdwg.mxu0
  %228 = vmatpush.xpose.msra.mxu0 0.0
  %229 = vmatpush.xpose.msra.mxu0 0.0
  %230 = vmatpush.xpose.msra.mxu0 0.0
  %231 = vmatpush.xpose.msra.mxu0 0.0
  %232 = vmatpush.xpose.msra.mxu0 0.0
  %233 = vmatpush.xpose.msra.mxu0 0.0
  %234 = vmatpush.xpose.msra.mxu0 0.0
  %235 = vmatpush.xpose.msra.mxu0 0.0
  %236 = vmatpush.xpose.msra.mxu0 0.0
  %237 = vmatpush.xpose.msra.mxu0 0.0
  %238 = vmatpush.xpose.msra.mxu0 0.0
  %239 = vmatpush.xpose.msra.mxu0 0.0
  %240 = vmatpush.xpose.msra.mxu0 0.0
  %241 = vmatpush.xpose.msra.mxu0 0.0
  %242 = vmatpush.xpose.msra.mxu0 0.0
  %243 = vmatpush.xpose.msra.mxu0 %v158
  %244 = vmatmul.f32.gmra.mxu0 %v34
  %v245 = vpop.f32.mrf.mxu0
  %v246 = vadd.f32 0.0, %v245
  %247 = vdwg.mxu0
  %248 = vmatpush.xpose.msra.mxu0 0.0
  %249 = vmatpush.xpose.msra.mxu0 0.0
  %250 = vmatpush.xpose.msra.mxu0 0.0
  %251 = vmatpush.xpose.msra.mxu0 0.0
  %252 = vmatpush.xpose.msra.mxu0 0.0
  %253 = vmatpush.xpose.msra.mxu0 0.0
  %254 = vmatpush.xpose.msra.mxu0 0.0
  %255 = vmatpush.xpose.msra.mxu0 0.0
  %256 = vmatpush.xpose.msra.mxu0 0.0
  %257 = vmatpush.xpose.msra.mxu0 0.0
  %258 = vmatpush.xpose.msra.mxu0 0.0
  %259 = vmatpush.xpose.msra.mxu0 0.0
  %260 = vmatpush.xpose.msra.mxu0 0.0
  %261 = vmatpush.xpose.msra.mxu0 0.0
  %262 = vmatpush.xpose.msra.mxu0 0.0
  %263 = vmatpush.xpose.msra.mxu0 %v159
  %264 = vmatmul.f32.gmra.mxu0 %v35
  %v265 = vpop.f32.mrf.mxu0
  %v266 = vadd.f32 0.0, %v265
  %267 = vdwg.mxu0
  %268 = vmatpush.xpose.msra.mxu0 0.0
  %269 = vmatpush.xpose.msra.mxu0 0.0
  %270 = vmatpush.xpose.msra.mxu0 0.0
  %271 = vmatpush.xpose.msra.mxu0 0.0
  %272 = vmatpush.xpose.msra.mxu0 0.0
  %273 = vmatpush.xpose.msra.mxu0 0.0
  %274 = vmatpush.xpose.msra.mxu0 0.0
  %275 = vmatpush.xpose.msra.mxu0 0.0
  %276 = vmatpush.xpose.msra.mxu0 0.0
  %277 = vmatpush.xpose.msra.mxu0 0.0
  %278 = vmatpush.xpose.msra.mxu0 0.0
  %279 = vmatpush.xpose.msra.mxu0 0.0
  %280 = vmatpush.xpose.msra.mxu0 0.0
  %281 = vmatpush.xpose.msra.mxu0 0.0
  %282 = vmatpush.xpose.msra.mxu0 0.0
  %283 = vmatpush.xpose.msra.mxu0 %v160
  %284 = vmatmul.f32.gmra.mxu0 %v36
  %v285 = vpop.f32.mrf.mxu0
  %v286 = vadd.f32 0.0, %v285
  %287 = vdwg.mxu0
  %288 = vmatpush.xpose.msra.mxu0 0.0
  %289 = vmatpush.xpose.msra.mxu0 0.0
  %290 = vmatpush.xpose.msra.mxu0 0.0
  %291 = vmatpush.xpose.msra.mxu0 0.0
  %292 = vmatpush.xpose.msra.mxu0 0.0
  %293 = vmatpush.xpose.msra.mxu0 0.0
  %294 = vmatpush.xpose.msra.mxu0 0.0
  %295 = vmatpush.xpose.msra.mxu0 0.0
  %296 = vmatpush.xpose.msra.mxu0 0.0
  %297 = vmatpush.xpose.msra.mxu0 0.0
  %298 = vmatpush.xpose.msra.mxu0 0.0
  %299 = vmatpush.xpose.msra.mxu0 0.0
  %300 = vmatpush.xpose.msra.mxu0 0.0
  %301 = vmatpush.xpose.msra.mxu0 0.0
  %302 = vmatpush.xpose.msra.mxu0 0.0
  %303 = vmatpush.xpose.msra.mxu0 %v161
  %304 = vmatmul.f32.gmra.mxu0 %v37
  %v305 = vpop.f32.mrf.mxu0
  %v306 = vadd.f32 0.0, %v305
  %307 = vdwg.mxu0
  %308 = vmatpush.xpose.msra.mxu0 0.0
  %309 = vmatpush.xpose.msra.mxu0 0.0
  %310 = vmatpush.xpose.msra.mxu0 0.0
  %311 = vmatpush.xpose.msra.mxu0 0.0
  %312 = vmatpush.xpose.msra.mxu0 0.0
  %313 = vmatpush.xpose.msra.mxu0 0.0
  %314 = vmatpush.xpose.msra.mxu0 0.0
  %315 = vmatpush.xpose.msra.mxu0 0.0
  %316 = vmatpush.xpose.msra.mxu0 0.0
  %317 = vmatpush.xpose.msra.mxu0 0.0
  %318 = vmatpush.xpose.msra.mxu0 0.0
  %319 = vmatpush.xpose.msra.mxu0 0.0
  %320 = vmatpush.xpose.msra.mxu0 0.0
  %321 = vmatpush.xpose.msra.mxu0 0.0
  %322 = vmatpush.xpose.msra.mxu0 0.0
  %323 = vmatpush.xpose.msra.mxu0 %v162
  %324 = vmatmul.f32.gmra.mxu0 %v38
  %v325 = vpop.f32.mrf.mxu0
  %v326 = vadd.f32 0.0, %v325
  %327 = vdwg.mxu0
  %328 = vmatpush.xpose.msra.mxu0 0.0
  %329 = vmatpush.xpose.msra.mxu0 0.0
  %330 = vmatpush.xpose.msra.mxu0 0.0
  %331 = vmatpush.xpose.msra.mxu0 0.0
  %332 = vmatpush.xpose.msra.mxu0 0.0
  %333 = vmatpush.xpose.msra.mxu0 0.0
  %334 = vmatpush.xpose.msra.mxu0 0.0
  %335 = vmatpush.xpose.msra.mxu0 0.0
  %336 = vmatpush.xpose.msra.mxu0 0.0
  %337 = vmatpush.xpose.msra.mxu0 0.0
  %338 = vmatpush.xpose.msra.mxu0 0.0
  %339 = vmatpush.xpose.msra.mxu0 0.0
  %340 = vmatpush.xpose.msra.mxu0 0.0
  %341 = vmatpush.xpose.msra.mxu0 0.0
  %342 = vmatpush.xpose.msra.mxu0 0.0
  %343 = vmatpush.xpose.msra.mxu0 %v163
  %344 = vmatmul.f32.gmra.mxu0 %v39
  %v345 = vpop.f32.mrf.mxu0
  %v346 = vadd.f32 0.0, %v345
  %347 = vdwg.mxu0
  %v348 = vmul.f32 %v206, 0.088388346
  %v349 = vmul.f32 %v226, 0.088388346
  %v350 = vmul.f32 %v246, 0.088388346
  %v351 = vmul.f32 %v266, 0.088388346
  %v352 = vmul.f32 %v286, 0.088388346
  %v353 = vmul.f32 %v306, 0.088388346
  %v354 = vmul.f32 %v326, 0.088388346
  %v355 = vmul.f32 %v346, 0.088388346
  %v356 = vadd.f32 %v348, %v180
  %v357 = vadd.f32 %v349, %v181
  %v358 = vadd.f32 %v350, %v182
  %v359 = vadd.f32 %v351, %v183
  %v360 = vadd.f32 %v352, %v184
  %v361 = vadd.f32 %v353, %v185
  %v362 = vadd.f32 %v354, %v186
  %v363 = vadd.f32 %v355, %v187
  %vm364 = vcmask 57344
  %v365 = vsel %vm364, %v356, -inf
  %366 = vmax.xlane.f32.xlu0 %v365
  %v367 = vpop.xlane.xlu0 %366
  %v368 = vsel %vm364, %v357, -inf
  %369 = vmax.xlane.f32.xlu0 %v368
  %v370 = vpop.xlane.xlu0 %369
  %v371 = vsel %vm364, %v358, -inf
  %372 = vmax.xlane.f32.xlu0 %v371
  %v373 = vpop.xlane.xlu0 %372
  %v374 = vsel %vm364, %v359, -inf
  %375 = vmax.xlane.f32.xlu0 %v374
  %v376 = vpop.xlane.xlu0 %375
  %v377 = vsel %vm364, %v360, -inf
  %378 = vmax.xlane.f32.xlu0 %v377
  %v379 = vpop.xlane.xlu0 %378
  %v380 = vsel %vm364, %v361, -inf
  %381 = vmax.xlane.f32.xlu0 %v380
  %v382 = vpop.xlane.xlu0 %381
  %v383 = vsel %vm364, %v362, -inf
  %384 = vmax.xlane.f32.xlu0 %v383
  %v385 = vpop.xlane.xlu0 %384
  %v386 = vsel %vm364, %v363, -inf
  %387 = vmax.xlane.f32.xlu0 %v386
  %v388 = vpop.xlane.xlu0 %387
  %v389 = vsub.f32 %v356, %v367
  %v390 = vsub.f32 %v357, %v370
  %v391 = vsub.f32 %v358, %v373
  %v392 = vsub.f32 %v359, %v376
  %v393 = vsub.f32 %v360, %v379
  %v394 = vsub.f32 %v361, %v382
  %v395 = vsub.f32 %v362, %v385
  %v396 = vsub.f32 %v363, %v388
  %v397 = vmul.f32 %v389, 1.442695
  %v398 = vpow.pop %v397
  %v399 = vmul.f32 %v390, 1.442695
  %v400 = vpow.pop %v399
  %v401 = vmul.f32 %v391, 1.442695
  %v402 = vpow.pop %v401
  %v403 = vmul.f32 %v392, 1.442695
  %v404 = vpow.pop %v403
  %v405 = vmul.f32 %v393, 1.442695
  %v406 = vpow.pop %v405
  %v407 = vmul.f32 %v394, 1.442695
  %v408 = vpow.pop %v407
  %v409 = vmul.f32 %v395, 1.442695
  %v410 = vpow.pop %v409
  %v411 = vmul.f32 %v396, 1.442695
  %v412 = vpow.pop %v411
  %v413 = vsel %vm364, %v398, 0.0
  %414 = vadd.xlane.f32.xlu0 %v413
  %v415 = vpop.xlane.xlu0 %414
  %v416 = vsel %vm364, %v400, 0.0
  %417 = vadd.xlane.f32.xlu0 %v416
  %v418 = vpop.xlane.xlu0 %417
  %v419 = vsel %vm364, %v402, 0.0
  %420 = vadd.xlane.f32.xlu0 %v419
  %v421 = vpop.xlane.xlu0 %420
  %v422 = vsel %vm364, %v404, 0.0
  %423 = vadd.xlane.f32.xlu0 %v422
  %v424 = vpop.xlane.xlu0 %423
  %v425 = vsel %vm364, %v406, 0.0
  %426 = vadd.xlane.f32.xlu0 %v425
  %v427 = vpop.xlane.xlu0 %426
  %v428 = vsel %vm364, %v408, 0.0
  %429 = vadd.xlane.f32.xlu0 %v428
  %v430 = vpop.xlane.xlu0 %429
  %v431 = vsel %vm364, %v410, 0.0
  %432 = vadd.xlane.f32.xlu0 %v431
  %v433 = vpop.xlane.xlu0 %432
  %v434 = vsel %vm364, %v412, 0.0
  %435 = vadd.xlane.f32.xlu0 %v434
  %v436 = vpop.xlane.xlu0 %435
  %v437 = vrcp.pop %v415
  %v438 = vmul.f32 %v415, %v437
  %v439 = vsub.f32 1.0, %v438
  %v440 = vmul.f32 %v437, %v439
  %v441 = vadd.f32 %v437, %v440
  %vm442 = vweird.f32 %v415
  %vm443 = vweird.f32 %v437
  %vm444 = vmor %vm442, %vm443
  %v445 = vsel %vm444, %v437, %v441
  %v446 = vand.u32 2147483647, %v415
  %vm447 = vcmp.eq.f32.partialorder %v446, 8.507059e+37
  %v448 = vand.u32 %v415, 2147483648
  %v449 = vor.u32 1.1754944e-38, %v448
  %v450 = vsel %vm447, %v449, %v445
  %v451 = vmul.f32 %v398, %v450
  %v452 = vrcp.pop %v418
  %v453 = vmul.f32 %v418, %v452
  %v454 = vsub.f32 1.0, %v453
  %v455 = vmul.f32 %v452, %v454
  %v456 = vadd.f32 %v452, %v455
  %vm457 = vweird.f32 %v418
  %vm458 = vweird.f32 %v452
  %vm459 = vmor %vm457, %vm458
  %v460 = vsel %vm459, %v452, %v456
  %v461 = vand.u32 2147483647, %v418
  %vm462 = vcmp.eq.f32.partialorder %v461, 8.507059e+37
  %v463 = vand.u32 %v418, 2147483648
  %v464 = vor.u32 1.1754944e-38, %v463
  %v465 = vsel %vm462, %v464, %v460
  %v466 = vmul.f32 %v400, %v465
  %v467 = vrcp.pop %v421
  %v468 = vmul.f32 %v421, %v467
  %v469 = vsub.f32 1.0, %v468
  %v470 = vmul.f32 %v467, %v469
  %v471 = vadd.f32 %v467, %v470
  %vm472 = vweird.f32 %v421
  %vm473 = vweird.f32 %v467
  %vm474 = vmor %vm472, %vm473
  %v475 = vsel %vm474, %v467, %v471
  %v476 = vand.u32 2147483647, %v421
  %vm477 = vcmp.eq.f32.partialorder %v476, 8.507059e+37
  %v478 = vand.u32 %v421, 2147483648
  %v479 = vor.u32 1.1754944e-38, %v478
  %v480 = vsel %vm477, %v479, %v475
  %v481 = vmul.f32 %v402, %v480
  %v482 = vrcp.pop %v424
  %v483 = vmul.f32 %v424, %v482
  %v484 = vsub.f32 1.0, %v483
  %v485 = vmul.f32 %v482, %v484
  %v486 = vadd.f32 %v482, %v485
  %vm487 = vweird.f32 %v424
  %vm488 = vweird.f32 %v482
  %vm489 = vmor %vm487, %vm488
  %v490 = vsel %vm489, %v482, %v486
  %v491 = vand.u32 2147483647, %v424
  %vm492 = vcmp.eq.f32.partialorder %v491, 8.507059e+37
  %v493 = vand.u32 %v424, 2147483648
  %v494 = vor.u32 1.1754944e-38, %v493
  %v495 = vsel %vm492, %v494, %v490
  %v496 = vmul.f32 %v404, %v495
  %v497 = vrcp.pop %v427
  %v498 = vmul.f32 %v427, %v497
  %v499 = vsub.f32 1.0, %v498
  %v500 = vmul.f32 %v497, %v499
  %v501 = vadd.f32 %v497, %v500
  %vm502 = vweird.f32 %v427
  %vm503 = vweird.f32 %v497
  %vm504 = vmor %vm502, %vm503
  %v505 = vsel %vm504, %v497, %v501
  %v506 = vand.u32 2147483647, %v427
  %vm507 = vcmp.eq.f32.partialorder %v506, 8.507059e+37
  %v508 = vand.u32 %v427, 2147483648
  %v509 = vor.u32 1.1754944e-38, %v508
  %v510 = vsel %vm507, %v509, %v505
  %v511 = vmul.f32 %v406, %v510
  %v512 = vrcp.pop %v430
  %v513 = vmul.f32 %v430, %v512
  %v514 = vsub.f32 1.0, %v513
  %v515 = vmul.f32 %v512, %v514
  %v516 = vadd.f32 %v512, %v515
  %vm517 = vweird.f32 %v430
  %vm518 = vweird.f32 %v512
  %vm519 = vmor %vm517, %vm518
  %v520 = vsel %vm519, %v512, %v516
  %v521 = vand.u32 2147483647, %v430
  %vm522 = vcmp.eq.f32.partialorder %v521, 8.507059e+37
  %v523 = vand.u32 %v430, 2147483648
  %v524 = vor.u32 1.1754944e-38, %v523
  %v525 = vsel %vm522, %v524, %v520
  %v526 = vmul.f32 %v408, %v525
  %v527 = vrcp.pop %v433
  %v528 = vmul.f32 %v433, %v527
  %v529 = vsub.f32 1.0, %v528
  %v530 = vmul.f32 %v527, %v529
  %v531 = vadd.f32 %v527, %v530
  %vm532 = vweird.f32 %v433
  %vm533 = vweird.f32 %v527
  %vm534 = vmor %vm532, %vm533
  %v535 = vsel %vm534, %v527, %v531
  %v536 = vand.u32 2147483647, %v433
  %vm537 = vcmp.eq.f32.partialorder %v536, 8.507059e+37
  %v538 = vand.u32 %v433, 2147483648
  %v539 = vor.u32 1.1754944e-38, %v538
  %v540 = vsel %vm537, %v539, %v535
  %v541 = vmul.f32 %v410, %v540
  %v542 = vrcp.pop %v436
  %v543 = vmul.f32 %v436, %v542
  %v544 = vsub.f32 1.0, %v543
  %v545 = vmul.f32 %v542, %v544
  %v546 = vadd.f32 %v542, %v545
  %vm547 = vweird.f32 %v436
  %vm548 = vweird.f32 %v542
  %vm549 = vmor %vm547, %vm548
  %v550 = vsel %vm549, %v542, %v546
  %v551 = vand.u32 2147483647, %v436
  %vm552 = vcmp.eq.f32.partialorder %v551, 8.507059e+37
  %v553 = vand.u32 %v436, 2147483648
  %v554 = vor.u32 1.1754944e-38, %v553
  %v555 = vsel %vm552, %v554, %v550
  %v556 = vmul.f32 %v412, %v555
  %vm557 = vcmask 64512
  %v559 = vsel %vm557, %v451, 0
  %561 = vmatpush.msra.mxu0 0.0
  %562 = vmatpush.msra.mxu0 0.0
  %563 = vmatpush.msra.mxu0 0.0
  %564 = vmatpush.msra.mxu0 0.0
  %565 = vmatpush.msra.mxu0 0.0
  %566 = vmatpush.msra.mxu0 0.0
  %567 = vmatpush.msra.mxu0 0.0
  %568 = vmatpush.msra.mxu0 0.0
  %569 = vmatpush.msra.mxu0 0.0
  %570 = vmatpush.msra.mxu0 0.0
  %571 = vmatpush.msra.mxu0 0.0
  %572 = vmatpush.msra.mxu0 0.0
  %573 = vmatpush.msra.mxu0 0.0
  %574 = vmatpush.msra.mxu0 0.0
  %575 = vmatpush.msra.mxu0 0.0
  %576 = vmatpush.msra.mxu0 %v156
  %577 = vmatmul.f32.gmra.mxu0 %v559
  %v578 = vpop.f32.mrf.mxu0
  %v579 = vadd.f32 0.0, %v578
  %580 = vdwg.mxu0
  %v582 = vsel %vm557, %v466, 0
  %584 = vmatpush.msra.mxu0 0.0
  %585 = vmatpush.msra.mxu0 0.0
  %586 = vmatpush.msra.mxu0 0.0
  %587 = vmatpush.msra.mxu0 0.0
  %588 = vmatpush.msra.mxu0 0.0
  %589 = vmatpush.msra.mxu0 0.0
  %590 = vmatpush.msra.mxu0 0.0
  %591 = vmatpush.msra.mxu0 0.0
  %592 = vmatpush.msra.mxu0 0.0
  %593 = vmatpush.msra.mxu0 0.0
  %594 = vmatpush.msra.mxu0 0.0
  %595 = vmatpush.msra.mxu0 0.0
  %596 = vmatpush.msra.mxu0 0.0
  %597 = vmatpush.msra.mxu0 0.0
  %598 = vmatpush.msra.mxu0 0.0
  %599 = vmatpush.msra.mxu0 %v157
  %600 = vmatmul.f32.gmra.mxu0 %v582
  %v601 = vpop.f32.mrf.mxu0
  %v602 = vadd.f32 0.0, %v601
  %603 = vdwg.mxu0
  %v605 = vsel %vm557, %v481, 0
  %607 = vmatpush.msra.mxu0 0.0
  %608 = vmatpush.msra.mxu0 0.0
  %609 = vmatpush.msra.mxu0 0.0
  %610 = vmatpush.msra.mxu0 0.0
  %611 = vmatpush.msra.mxu0 0.0
  %612 = vmatpush.msra.mxu0 0.0
  %613 = vmatpush.msra.mxu0 0.0
  %614 = vmatpush.msra.mxu0 0.0
  %615 = vmatpush.msra.mxu0 0.0
  %616 = vmatpush.msra.mxu0 0.0
  %617 = vmatpush.msra.mxu0 0.0
  %618 = vmatpush.msra.mxu0 0.0
  %619 = vmatpush.msra.mxu0 0.0
  %620 = vmatpush.msra.mxu0 0.0
  %621 = vmatpush.msra.mxu0 0.0
  %622 = vmatpush.msra.mxu0 %v158
  %623 = vmatmul.f32.gmra.mxu0 %v605
  %v624 = vpop.f32.mrf.mxu0
  %v625 = vadd.f32 0.0, %v624
  %626 = vdwg.mxu0
  %v628 = vsel %vm557, %v496, 0
  %630 = vmatpush.msra.mxu0 0.0
  %631 = vmatpush.msra.mxu0 0.0
  %632 = vmatpush.msra.mxu0 0.0
  %633 = vmatpush.msra.mxu0 0.0
  %634 = vmatpush.msra.mxu0 0.0
  %635 = vmatpush.msra.mxu0 0.0
  %636 = vmatpush.msra.mxu0 0.0
  %637 = vmatpush.msra.mxu0 0.0
  %638 = vmatpush.msra.mxu0 0.0
  %639 = vmatpush.msra.mxu0 0.0
  %640 = vmatpush.msra.mxu0 0.0
  %641 = vmatpush.msra.mxu0 0.0
  %642 = vmatpush.msra.mxu0 0.0
  %643 = vmatpush.msra.mxu0 0.0
  %644 = vmatpush.msra.mxu0 0.0
  %645 = vmatpush.msra.mxu0 %v159
  %646 = vmatmul.f32.gmra.mxu0 %v628
  %v647 = vpop.f32.mrf.mxu0
  %v648 = vadd.f32 0.0, %v647
  %649 = vdwg.mxu0
  %v651 = vsel %vm557, %v511, 0
  %653 = vmatpush.msra.mxu0 0.0
  %654 = vmatpush.msra.mxu0 0.0
  %655 = vmatpush.msra.mxu0 0.0
  %656 = vmatpush.msra.mxu0 0.0
  %657 = vmatpush.msra.mxu0 0.0
  %658 = vmatpush.msra.mxu0 0.0
  %659 = vmatpush.msra.mxu0 0.0
  %660 = vmatpush.msra.mxu0 0.0
  %661 = vmatpush.msra.mxu0 0.0
  %662 = vmatpush.msra.mxu0 0.0
  %663 = vmatpush.msra.mxu0 0.0
  %664 = vmatpush.msra.mxu0 0.0
  %665 = vmatpush.msra.mxu0 0.0
  %666 = vmatpush.msra.mxu0 0.0
  %667 = vmatpush.msra.mxu0 0.0
  %668 = vmatpush.msra.mxu0 %v160
  %669 = vmatmul.f32.gmra.mxu0 %v651
  %v670 = vpop.f32.mrf.mxu0
  %v671 = vadd.f32 0.0, %v670
  %672 = vdwg.mxu0
  %v674 = vsel %vm557, %v526, 0
  %676 = vmatpush.msra.mxu0 0.0
  %677 = vmatpush.msra.mxu0 0.0
  %678 = vmatpush.msra.mxu0 0.0
  %679 = vmatpush.msra.mxu0 0.0
  %680 = vmatpush.msra.mxu0 0.0
  %681 = vmatpush.msra.mxu0 0.0
  %682 = vmatpush.msra.mxu0 0.0
  %683 = vmatpush.msra.mxu0 0.0
  %684 = vmatpush.msra.mxu0 0.0
  %685 = vmatpush.msra.mxu0 0.0
  %686 = vmatpush.msra.mxu0 0.0
  %687 = vmatpush.msra.mxu0 0.0
  %688 = vmatpush.msra.mxu0 0.0
  %689 = vmatpush.msra.mxu0 0.0
  %690 = vmatpush.msra.mxu0 0.0
  %691 = vmatpush.msra.mxu0 %v161
  %692 = vmatmul.f32.gmra.mxu0 %v674
  %v693 = vpop.f32.mrf.mxu0
  %v694 = vadd.f32 0.0, %v693
  %695 = vdwg.mxu0
  %v697 = vsel %vm557, %v541, 0
  %699 = vmatpush.msra.mxu0 0.0
  %700 = vmatpush.msra.mxu0 0.0
  %701 = vmatpush.msra.mxu0 0.0
  %702 = vmatpush.msra.mxu0 0.0
  %703 = vmatpush.msra.mxu0 0.0
  %704 = vmatpush.msra.mxu0 0.0
  %705 = vmatpush.msra.mxu0 0.0
  %706 = vmatpush.msra.mxu0 0.0
  %707 = vmatpush.msra.mxu0 0.0
  %708 = vmatpush.msra.mxu0 0.0
  %709 = vmatpush.msra.mxu0 0.0
  %710 = vmatpush.msra.mxu0 0.0
  %711 = vmatpush.msra.mxu0 0.0
  %712 = vmatpush.msra.mxu0 0.0
  %713 = vmatpush.msra.mxu0 0.0
  %714 = vmatpush.msra.mxu0 %v162
  %715 = vmatmul.f32.gmra.mxu0 %v697
  %v716 = vpop.f32.mrf.mxu0
  %v717 = vadd.f32 0.0, %v716
  %718 = vdwg.mxu0
  %v720 = vsel %vm557, %v556, 0
  %722 = vmatpush.msra.mxu0 0.0
  %723 = vmatpush.msra.mxu0 0.0
  %724 = vmatpush.msra.mxu0 0.0
  %725 = vmatpush.msra.mxu0 0.0
  %726 = vmatpush.msra.mxu0 0.0
  %727 = vmatpush.msra.mxu0 0.0
  %728 = vmatpush.msra.mxu0 0.0
  %729 = vmatpush.msra.mxu0 0.0
  %730 = vmatpush.msra.mxu0 0.0
  %731 = vmatpush.msra.mxu0 0.0
  %732 = vmatpush.msra.mxu0 0.0
  %733 = vmatpush.msra.mxu0 0.0
  %734 = vmatpush.msra.mxu0 0.0
  %735 = vmatpush.msra.mxu0 0.0
  %736 = vmatpush.msra.mxu0 0.0
  %737 = vmatpush.msra.mxu0 %v163
  %738 = vmatmul.f32.gmra.mxu0 %v720
  %v739 = vpop.f32.mrf.mxu0
  %v740 = vadd.f32 0.0, %v739
  %741 = vdwg.mxu0
  %v742 = vadd.f32 %v579, 0.0
  %v743 = vadd.f32 %v602, 0.0
  %v744 = vadd.f32 %v625, 0.0
  %v745 = vadd.f32 %v648, 0.0
  %v746 = vadd.f32 %v671, 0.0
  %v747 = vadd.f32 %v694, 0.0
  %v748 = vadd.f32 %v717, 0.0
  %v749 = vadd.f32 %v740, 0.0
  %v750 = vld [vmem:[%s5] sm:$0xff]
  %v751 = vld [vmem:[%s5 + $0x8] sm:$0xff]
  %v752 = vld [vmem:[%s5 + $0x10] sm:$0xff]
  %v753 = vld [vmem:[%s5 + $0x18] sm:$0xff]
  %v754 = vld [vmem:[%s5 + $0x20] sm:$0xff]
  %v755 = vld [vmem:[%s5 + $0x28] sm:$0xff]
  %v756 = vld [vmem:[%s5 + $0x30] sm:$0xff]
  %v757 = vld [vmem:[%s5 + $0x38] sm:$0xff]
  %v758 = vld [vmem:[%s5 + $0x40] sm:$0xff]
  %v759 = vld [vmem:[%s5 + $0x48] sm:$0xff]
  %v760 = vld [vmem:[%s5 + $0x50] sm:$0xff]
  %v761 = vld [vmem:[%s5 + $0x58] sm:$0xff]
  %v762 = vld [vmem:[%s5 + $0x60] sm:$0xff]
  %v763 = vld [vmem:[%s5 + $0x68] sm:$0xff]
  %v764 = vld [vmem:[%s5 + $0x70] sm:$0xff]
  %v765 = vld [vmem:[%s5 + $0x78] sm:$0xff]
  %v766 = vld [vmem:[%s6] sm:$0x1]
  %v768 = vperm.slane %v766, 0
  %v778 = vrot.slane %v743, 7
  %vm779 = vcmask 1041409
  %v780 = vsel %vm779, %v778, %v742
  %v781 = vrot.slane %v744, 6
  %vm782 = vcmask 1042434
  %v783 = vsel %vm782, %v781, %v780
  %v784 = vrot.slane %v745, 5
  %vm785 = vcmask 1043459
  %v786 = vsel %vm785, %v784, %v783
  %v787 = vrot.slane %v746, 4
  %vm788 = vcmask 1044484
  %v789 = vsel %vm788, %v787, %v786
  %v790 = vrot.slane %v747, 3
  %vm791 = vcmask 1045509
  %v792 = vsel %vm791, %v790, %v789
  %v793 = vrot.slane %v748, 2
  %vm794 = vcmask 1046534
  %v795 = vsel %vm794, %v793, %v792
  %v796 = vrot.slane %v749, 1
  %vm797 = vcmask 1047559
  %v798 = vsel %vm797, %v796, %v795
  %800 = vmatpush.msra.mxu0 %v765
  %801 = vmatpush.msra.mxu0 %v764
  %802 = vmatpush.msra.mxu0 %v763
  %803 = vmatpush.msra.mxu0 %v762
  %804 = vmatpush.msra.mxu0 %v761
  %805 = vmatpush.msra.mxu0 %v760
  %806 = vmatpush.msra.mxu0 %v759
  %807 = vmatpush.msra.mxu0 %v758
  %808 = vmatpush.msra.mxu0 %v757
  %809 = vmatpush.msra.mxu0 %v756
  %810 = vmatpush.msra.mxu0 %v755
  %811 = vmatpush.msra.mxu0 %v754
  %812 = vmatpush.msra.mxu0 %v753
  %813 = vmatpush.msra.mxu0 %v752
  %814 = vmatpush.msra.mxu0 %v751
  %815 = vmatpush.msra.mxu0 %v750
  %816 = vmatmul.f32.gmra.mxu0 %v798
  %v817 = vpop.f32.mrf.mxu0
  %v818 = vadd.f32 %v768, %v817
  %819 = vdwg.mxu0
  %v820 = vmax.f32 %v818, 0.0
  %v821 = vld [vmem:[%s7] sm:$0xff]
  %v822 = vld [vmem:[%s7 + $0x8] sm:$0xff]
  %v823 = vld [vmem:[%s7 + $0x10] sm:$0xff]
  %v824 = vld [vmem:[%s7 + $0x18] sm:$0xff]
  %v825 = vld [vmem:[%s8] sm:$0x1]
  %v827 = vperm.slane %v825, 0
  %vm829 = vcmask 261120
  %v831 = vsel %vm829, %v820, 0
  %833 = vmatpush.msra.mxu0 0.0
  %834 = vmatpush.msra.mxu0 0.0
  %835 = vmatpush.msra.mxu0 0.0
  %836 = vmatpush.msra.mxu0 0.0
  %837 = vmatpush.msra.mxu0 0.0
  %838 = vmatpush.msra.mxu0 0.0
  %839 = vmatpush.msra.mxu0 0.0
  %840 = vmatpush.msra.mxu0 0.0
  %841 = vmatpush.msra.mxu0 0.0
  %842 = vmatpush.msra.mxu0 0.0
  %843 = vmatpush.msra.mxu0 0.0
  %844 = vmatpush.msra.mxu0 0.0
  %845 = vmatpush.msra.mxu0 %v824
  %846 = vmatpush.msra.mxu0 %v823
  %847 = vmatpush.msra.mxu0 %v822
  %848 = vmatpush.msra.mxu0 %v821
  %849 = vmatmul.f32.gmra.mxu0 %v831
  %v850 = vpop.f32.mrf.mxu0
  %v851 = vadd.f32 %v827, %v850
  %852 = vdwg.mxu0
  %853 = vmax.xlane.f32.xlu0 %v851
  %v854 = vpop.xlane.xlu0 %853
  %v855 = vsub.f32 %v851, %v854
  %v856 = vmul.f32 %v855, 1.442695
  %v857 = vpow.pop %v856
  %858 = vadd.xlane.f32.xlu0 %v857
  %v859 = vpop.xlane.xlu0 %858
  %v860 = vrcp.pop %v859
  %v861 = vmul.f32 %v859, %v860
  %v862 = vsub.f32 1.0, %v861
  %v863 = vmul.f32 %v860, %v862
  %v864 = vadd.f32 %v860, %v863
  %vm865 = vweird.f32 %v859
  %vm866 = vweird.f32 %v860
  %vm867 = vmor %vm865, %vm866
  %v868 = vsel %vm867, %v860, %v864
  %v869 = vand.u32 2147483647, %v859
  %vm870 = vcmp.eq.f32.partialorder %v869, 8.507059e+37
  %v871 = vand.u32 %v859, 2147483648
  %v872 = vor.u32 1.1754944e-38, %v871
  %v873 = vsel %vm870, %v872, %v868
  %v874 = vmul.f32 %v857, %v873
  %875 = vst [vmem:[%s9] sm:$0xff] %v874
  // Predicated region
  $region38: #{fake_review_identifier.1} parent=0 // pred_check
    _
  $region39: #{fake_review_identifier.1} parent=0 // pred_check_branch
    %877 = sbr.rel (0) target = $region41
  $region40: #{fake_review_identifier.1} parent=0 // pred_region
    _
  $region41: #{fake_review_identifier.1} parent=0 // pred_fallthru
    _
  // Predicated region
  $region42: #{fake_review_identifier.1} parent=0 // pred_check
    _
  $region43: #{fake_review_identifier.1} parent=0 // pred_check_branch
    %879 = sbr.rel (0) target = $region45
  $region44: #{fake_review_identifier.1} parent=0 // pred_region
    _
  $region45: #{fake_review_identifier.1} parent=0 // pred_fallthru
    _

</llo_original>
